<compile_context>
chip_gen: v5e
topology: v5e:2x2
jax: 0.10.0
libtpu: 0.0.40
codegen_flags: <defaults>
</compile_context>

<pallas_src>
import functools

import jax
import jax.numpy as jnp
from jax.experimental import pallas as pl
from jax.experimental.pallas import tpu as pltpu


def _round_up(x, m):
    return (x + m - 1) // m * m


def _cdiv(a, b):
    return (a + b - 1) // b


def _vmem_capacity_bytes():
    """Per-TensorCore VMEM capacity; conservative fallback if the query fails."""
    try:
        cap = getattr(pltpu.get_tpu_info(), "vmem_capacity_bytes", None)
        if cap:
            return int(cap)
    except Exception:
        pass
    return 64 << 20  # v7x per-core VMEM; safe lower bound for v5e/v6e as well


def ffn_resident_kernel(x_ref, w1_ref, b1_ref, w2_ref, b2_ref, o_ref, *, cdt):
    """One row tile; full d_ff resident in VMEM: o = relu(x@W1 + b1) @ W2 + b2."""
    x = x_ref[...].astype(cdt)
    h = jnp.dot(x, w1_ref[...].astype(cdt), preferred_element_type=jnp.float32)
    h = jnp.maximum(h + b1_ref[...], 0.0)          # bias + ReLU in f32 on the VPU
    # Dropout is identity in eval mode.
    acc = jnp.dot(h.astype(cdt), w2_ref[...].astype(cdt),
                  preferred_element_type=jnp.float32)
    o_ref[...] = (acc + b2_ref[...]).astype(o_ref.dtype)


def ffn_streamed_kernel(x_ref, w1_ref, b1_ref, w2_ref, b2_ref, o_ref, acc_ref, *, cdt):
    """(row tile i, d_ff slice k): accumulate relu(x@W1_k + b1_k) @ W2_k into f32 scratch."""
    k = pl.program_id(1)

    @pl.when(k == 0)
    def _():
        acc_ref[...] = jnp.zeros_like(acc_ref)

    x = x_ref[...].astype(cdt)
    h = jnp.dot(x, w1_ref[...].astype(cdt), preferred_element_type=jnp.float32)
    h = jnp.maximum(h + b1_ref[...], 0.0)          # bias + ReLU in f32 on the VPU
    # Dropout is identity in eval mode.
    acc_ref[...] += jnp.dot(h.astype(cdt), w2_ref[...].astype(cdt),
                            preferred_element_type=jnp.float32)

    @pl.when(k == pl.num_programs(1) - 1)
    def _():
        o_ref[...] = (acc_ref[...] + b2_ref[...]).astype(o_ref.dtype)


@functools.partial(jax.jit, static_argnames=("tm", "compute_dtype", "force_streamed"))
def standard_ffn(x, w1, b1, w2, b2, *, tm=512, compute_dtype=None, force_streamed=False):
    """StandardFFN forward (eval mode).

    x : (batch, seq, d_model)
    w1: (d_model, d_ff)   (pre-transposed vs torch Linear.weight)
    b1: (d_ff,)
    w2: (d_ff, d_model)
    b2: (d_model,)
    compute_dtype: dtype fed to the MXU (e.g. jnp.bfloat16); accumulation stays f32.
                   For peak throughput pass the weights already in compute_dtype.
    """
    batch, seq, d_model = x.shape
    d_ff = w1.shape[1]
    out_dtype = x.dtype
    cdt = jnp.dtype(x.dtype if compute_dtype is None else compute_dtype)

    M = batch * seq
    dm_p = _round_up(max(d_model, 1), 128)    # lane-dense stores, MXU-friendly
    dff_p = _round_up(max(d_ff, 1), 128)

    # ---- per-generation VMEM budget (v5e/v6e ~100 MiB, v7x ~50 MiB) ------------------
    vmem_cap = _vmem_capacity_bytes()
    vmem_limit = max(min(int(vmem_cap * 0.82), vmem_cap - (8 << 20)), 32 << 20)
    budget = vmem_limit - (4 << 20)           # slack for compiler internals

    x_bytes = jnp.dtype(x.dtype).itemsize
    w1_bytes = jnp.dtype(w1.dtype).itemsize
    w2_bytes = jnp.dtype(w2.dtype).itemsize
    out_bytes = jnp.dtype(out_dtype).itemsize
    cbytes = cdt.itemsize
    cast_x = jnp.dtype(x.dtype) != cdt
    cast_w = (jnp.dtype(w1.dtype) != cdt) or (jnp.dtype(w2.dtype) != cdt)

    def vmem_est(tm_c, tff_c):
        resident = tff_c >= dff_p
        e = 2 * tm_c * dm_p * (x_bytes + out_bytes)      # x / out tiles (double-buffered)
        e += 2 * dm_p * tff_c * w1_bytes                 # W1 slice (2 bufs, conservative)
        e += 2 * tff_c * dm_p * w2_bytes                 # W2 slice (2 bufs, conservative)
        e += 2 * 8 * (tff_c + dm_p) * 4                  # biases (sublane-padded f32)
        e += tm_c * tff_c * (4 + cbytes)                 # hidden tile f32 + cdt cast
        if cast_x:
            e += tm_c * dm_p * cbytes                    # in-kernel x cast temp
        if cast_w:
            e += 2 * dm_p * tff_c * cbytes               # in-kernel weight cast temps
        if not resident:
            e += tm_c * dm_p * 4                         # f32 accumulator scratch
        return e

    # ---- row tiling: near-equal chunks of M; >=2 tiles when M is big (v7x megacore) ---
    tm_req = min(_round_up(tm, 8), _round_up(M, 8))
    n_i0 = max(_cdiv(M, tm_req), 2 if M >= 256 else 1)
    tm_eff = _round_up(_cdiv(M, n_i0), 8)

    # ---- fit search: resident weights first, then near-equal d_ff chunks, then smaller tm
    chosen = None
    tm_c = tm_eff
    while chosen is None:
        for nk in range(1, dff_p // 128 + 1):
            tff_c = _round_up(_cdiv(dff_p, nk), 128)
            if vmem_est(tm_c, tff_c) <= budget:
                chosen = (tm_c, tff_c)
                break
        if chosen is None:
            if tm_c <= 8:
                chosen = (8, 128)       # last resort; rely on compiler spill handling
            else:
                tm_c = max(8, _round_up(tm_c // 2, 8))
    tm_eff, tff_eff = chosen

    n_k = _cdiv(dff_p, tff_eff)
    dff_pad = n_k * tff_eff
    n_i = _cdiv(M, tm_eff)
    M_p = n_i * tm_eff
    resident = (n_k == 1) and not force_streamed

    # ---- zero padding (exact: padded W1 cols / W2 rows / output cols are sliced off) --
    def pad2(a, rows, cols):
        if rows or cols:
            return jnp.pad(a, ((0, rows), (0, cols)))
        return a

    x2d = pad2(x.reshape(M, d_model), M_p - M, dm_p - d_model)
    w1p = pad2(w1, dm_p - d_model, dff_pad - d_ff)
    w2p = pad2(w2, dff_pad - d_ff, dm_p - d_model)
    b1p = pad2(b1.reshape(1, d_ff).astype(jnp.float32), 0, dff_pad - d_ff)
    b2p = pad2(b2.reshape(1, d_model).astype(jnp.float32), 0, dm_p - d_model)

    weight_reads = 1 if resident else n_i
    cost = pl.CostEstimate(
        flops=4 * M_p * dm_p * dff_pad,
        transcendentals=0,
        bytes_accessed=int(
            M_p * dm_p * (x_bytes + out_bytes)
            + weight_reads * (dm_p * dff_pad * w1_bytes + dff_pad * dm_p * w2_bytes)
            + 8 * (dff_pad + dm_p) * 4),
    )

    if resident:
        kernel = functools.partial(ffn_resident_kernel, cdt=cdt)
        grid = (n_i,)
        in_specs = [
            pl.BlockSpec((tm_eff, dm_p), lambda i: (i, 0)),        # x row tile
            pl.BlockSpec((dm_p, dff_pad), lambda i: (0, 0)),       # W1 (resident, DMA'd once)
            pl.BlockSpec((1, dff_pad), lambda i: (0, 0)),          # b1 (resident)
            pl.BlockSpec((dff_pad, dm_p), lambda i: (0, 0)),       # W2 (resident, DMA'd once)
            pl.BlockSpec((1, dm_p), lambda i: (0, 0)),             # b2 (resident)
        ]
        out_specs = pl.BlockSpec((tm_eff, dm_p), lambda i: (i, 0))
        scratch_shapes = []
        dim_sem = ("parallel",)
    else:
        kernel = functools.partial(ffn_streamed_kernel, cdt=cdt)
        grid = (n_i, n_k)
        in_specs = [
            pl.BlockSpec((tm_eff, dm_p), lambda i, k: (i, 0)),     # x row tile
            pl.BlockSpec((dm_p, tff_eff), lambda i, k: (0, k)),    # W1 d_ff slice
            pl.BlockSpec((1, tff_eff), lambda i, k: (0, k)),       # b1 slice
            pl.BlockSpec((tff_eff, dm_p), lambda i, k: (k, 0)),    # W2 d_ff slice
            pl.BlockSpec((1, dm_p), lambda i, k: (0, 0)),          # b2
        ]
        out_specs = pl.BlockSpec((tm_eff, dm_p), lambda i, k: (i, 0))
        scratch_shapes = [pltpu.VMEM((tm_eff, dm_p), jnp.float32)]
        dim_sem = ("parallel", "arbitrary")

    out2d = pl.pallas_call(
        kernel,
        out_shape=jax.ShapeDtypeStruct((M_p, dm_p), out_dtype),
        grid_spec=pltpu.PrefetchScalarGridSpec(
            num_scalar_prefetch=0,
            grid=grid,
            in_specs=in_specs,
            out_specs=out_specs,
            scratch_shapes=scratch_shapes,
        ),
        compiler_params=pltpu.CompilerParams(
            dimension_semantics=dim_sem,
            vmem_limit_bytes=int(vmem_limit),
        ),
        cost_estimate=cost,
    )(x2d, w1p, b1p, w2p, b2p)

    return out2d[:M, :d_model].reshape(batch, seq, d_model)


def reference_ffn(x, w1, b1, w2, b2):
    h = jnp.maximum(jnp.einsum("bsd,df->bsf", x, w1) + b1, 0.0)
    return jnp.einsum("bsf,fd->bsd", h, w2) + b2


if __name__ == "__main__":
    batch, seq, d_model, d_ff = 2, 8, 32, 64

    key = jax.random.PRNGKey(0)
    kx, k1, kb1, k2, kb2 = jax.random.split(key, 5)

    x = jax.random.normal(kx, (batch, seq, d_model), dtype=jnp.float32)

    # Deterministic parameter init (PyTorch Linear-like uniform scale).
    lim1 = 1.0 / (d_model ** 0.5)
    lim2 = 1.0 / (d_ff ** 0.5)
    # Stored pre-transposed relative to torch.nn.Linear.weight:
    w1 = jax.random.uniform(k1, (d_model, d_ff), minval=-lim1, maxval=lim1,
                            dtype=jnp.float32)
    b1 = jax.random.uniform(kb1, (d_ff,), minval=-lim1, maxval=lim1,
                            dtype=jnp.float32)
    w2 = jax.random.uniform(k2, (d_ff, d_model), minval=-lim2, maxval=lim2,
                            dtype=jnp.float32)
    b2 = jax.random.uniform(kb2, (d_model,), minval=-lim2, maxval=lim2,
                            dtype=jnp.float32)

    ref = reference_ffn(x, w1, b1, w2, b2)

    # f32, resident-weights path (exact vs reference).
    out_f32 = jax.block_until_ready(standard_ffn(x, w1, b1, w2, b2))
    assert out_f32.shape == (batch, seq, d_model)
    assert jnp.allclose(out_f32, ref, atol=2e-5, rtol=2e-5), "f32 resident mismatch"

    # f32, streamed (accumulator) path — exercises the d_ff-reduction kernel.
    out_str = jax.block_until_ready(standard_ffn(x, w1, b1, w2, b2, force_streamed=True))
    assert jnp.allclose(out_str, ref, atol=2e-5, rtol=2e-5), "f32 streamed mismatch"

    # bf16 MXU path with f32 accumulation (recommended high-throughput config).
    out_bf16 = jax.block_until_ready(
        standard_ffn(x, w1, b1, w2, b2, compute_dtype=jnp.bfloat16))
    assert out_bf16.shape == (batch, seq, d_model)
    assert jnp.allclose(out_bf16.astype(jnp.float32), ref, atol=5e-2, rtol=5e-2), \
        "bf16 mismatch vs reference"

    print("KERNEL_OK")
</pallas_src>

<mosaic_0001>
module attributes {stable_mosaic.version = 11 : i64} {
  func.func @ffn_resident_kernel(%arg0: i32, %arg1: memref<16x128xf32, #tpu.memory_space<vmem>>, %arg2: memref<128x128xf32, #tpu.memory_space<vmem>>, %arg3: memref<1x128xf32, #tpu.memory_space<vmem>>, %arg4: memref<128x128xf32, #tpu.memory_space<vmem>>, %arg5: memref<1x128xf32, #tpu.memory_space<vmem>>, %arg6: memref<16x128xf32, #tpu.memory_space<vmem>>) attributes {dimension_semantics = [#tpu.dimension_semantics<parallel>], iteration_bounds = array<i64: 1>, scalar_prefetch = 0 : i64, scratch_operands = 0 : i64, tpu.core_type = #tpu.core_type<tc>, window_params = [{transform_indices = @transform_0, window_bounds = array<i64: 16, 128>}, {pipeline_mode = #tpu.pipeline_mode<synchronous>, transform_indices = @transform_1, window_bounds = array<i64: 128, 128>}, {pipeline_mode = #tpu.pipeline_mode<synchronous>, transform_indices = @transform_2, window_bounds = array<i64: 1, 128>}, {pipeline_mode = #tpu.pipeline_mode<synchronous>, transform_indices = @transform_3, window_bounds = array<i64: 128, 128>}, {pipeline_mode = #tpu.pipeline_mode<synchronous>, transform_indices = @transform_4, window_bounds = array<i64: 1, 128>}, {transform_indices = @transform_5, window_bounds = array<i64: 16, 128>}]} {
    %c0 = arith.constant 0 : index
    %c0_0 = arith.constant 0 : index
    %0 = vector.load %arg1[%c0, %c0_0] : memref<16x128xf32, #tpu.memory_space<vmem>>, vector<16x128xf32>
    %c0_1 = arith.constant 0 : index
    %c0_2 = arith.constant 0 : index
    %1 = vector.load %arg2[%c0_1, %c0_2] : memref<128x128xf32, #tpu.memory_space<vmem>>, vector<128x128xf32>
    %cst = arith.constant dense<0.000000e+00> : vector<16x128xf32>
    %2 = tpu.matmul %0, %1, %cst {dimension_numbers = #tpu.dot_dimension_numbers<[1], [0], [0], [1], [0, 0, 1, 1], [], []>} : vector<16x128xf32>, vector<128x128xf32>, vector<16x128xf32> -> vector<16x128xf32>
    %c0_3 = arith.constant 0 : index
    %c0_4 = arith.constant 0 : index
    %3 = vector.load %arg3[%c0_3, %c0_4] : memref<1x128xf32, #tpu.memory_space<vmem>>, vector<1x128xf32>
    %4 = vector.broadcast %3 : vector<1x128xf32> to vector<16x128xf32>
    %5 = arith.addf %2, %4 : vector<16x128xf32>
    %cst_5 = arith.constant 0.000000e+00 : f32
    %6 = vector.broadcast %cst_5 : f32 to vector<16x128xf32>
    %7 = arith.maximumf %5, %6 : vector<16x128xf32>
    %c0_6 = arith.constant 0 : index
    %c0_7 = arith.constant 0 : index
    %8 = vector.load %arg4[%c0_6, %c0_7] : memref<128x128xf32, #tpu.memory_space<vmem>>, vector<128x128xf32>
    %cst_8 = arith.constant dense<0.000000e+00> : vector<16x128xf32>
    %9 = tpu.matmul %7, %8, %cst_8 {dimension_numbers = #tpu.dot_dimension_numbers<[1], [0], [0], [1], [0, 0, 1, 1], [], []>} : vector<16x128xf32>, vector<128x128xf32>, vector<16x128xf32> -> vector<16x128xf32>
    %c0_9 = arith.constant 0 : index
    %c0_10 = arith.constant 0 : index
    %10 = vector.load %arg5[%c0_9, %c0_10] : memref<1x128xf32, #tpu.memory_space<vmem>>, vector<1x128xf32>
    %11 = vector.broadcast %10 : vector<1x128xf32> to vector<16x128xf32>
    %12 = arith.addf %9, %11 : vector<16x128xf32>
    %c0_11 = arith.constant 0 : index
    %c0_12 = arith.constant 0 : index
    %13 = vector.load %arg6[%c0_11, %c0_12] : memref<16x128xf32, #tpu.memory_space<vmem>>, vector<16x128xf32>
    tpu.vector_store %arg6[%c0_11, %c0_12], %12 {strides = array<i32>} : memref<16x128xf32, #tpu.memory_space<vmem>>, vector<16x128xf32>,
    return
  }
  func.func @transform_0(%arg0: i32) -> (i32, i32) {
    %c0_i32 = arith.constant 0 : i32
    %c0_i32_0 = arith.constant 0 : i32
    return %arg0, %c0_i32 : i32, i32
  }
  func.func @transform_1(%arg0: i32) -> (i32, i32) {
    %c0_i32 = arith.constant 0 : i32
    %c0_i32_0 = arith.constant 0 : i32
    %c0_i32_1 = arith.constant 0 : i32
    return %c0_i32, %c0_i32_0 : i32, i32
  }
  func.func @transform_2(%arg0: i32) -> (i32, i32) {
    %c0_i32 = arith.constant 0 : i32
    %c0_i32_0 = arith.constant 0 : i32
    %c0_i32_1 = arith.constant 0 : i32
    return %c0_i32, %c0_i32_0 : i32, i32
  }
  func.func @transform_3(%arg0: i32) -> (i32, i32) {
    %c0_i32 = arith.constant 0 : i32
    %c0_i32_0 = arith.constant 0 : i32
    %c0_i32_1 = arith.constant 0 : i32
    return %c0_i32, %c0_i32_0 : i32, i32
  }
  func.func @transform_4(%arg0: i32) -> (i32, i32) {
    %c0_i32 = arith.constant 0 : i32
    %c0_i32_0 = arith.constant 0 : i32
    %c0_i32_1 = arith.constant 0 : i32
    return %c0_i32, %c0_i32_0 : i32, i32
  }
  func.func @transform_5(%arg0: i32) -> (i32, i32) {
    %c0_i32 = arith.constant 0 : i32
    %c0_i32_0 = arith.constant 0 : i32
    return %arg0, %c0_i32 : i32, i32
  }
}

</mosaic_0001>

<llo_original>
// kernel: standard_ffn.1
$region0: #{standard_ffn.1}
  #allocation0 [shape = 'u32[]', space=smem, size = 0x4, offset = 0x4, fixed_abs, tag = 'smem constant byte address 0x4 - core index']
  #allocation1 [shape = 'u32[72,128]{1,0:T(1,128)}', space=vmem, size = 0x9000, scoped, tag = 'internal scratch']
  %s0 = inlined_call_operand.vmem [shape: f32[16,128], index: 0, kind: input, shape index: {}]
  %s1 = inlined_call_operand.vmem [shape: f32[128,128], index: 1, kind: input, shape index: {}]
  %s2 = inlined_call_operand.vmem [shape: f32[1,128], index: 2, kind: input, shape index: {}]
  %s3 = inlined_call_operand.vmem [shape: f32[128,128], index: 3, kind: input, shape index: {}]
  %s4 = inlined_call_operand.vmem [shape: f32[1,128], index: 4, kind: input, shape index: {}]
  %s5 = inlined_call_operand.vmem [shape: f32[16,128], index: 5, kind: output, shape index: {}]
  %s6 = sld [smem:[#allocation0]]
  $region30: #{standard_ffn.1} parent=0
    _
  %s8 = ssub.s32 1, %s6
  %s9 = scalar_select 0, %s8, %s6
  // Predicated region
  $region2: #{standard_ffn.1} parent=0 // pred_check
    _
  $region3: #{standard_ffn.1} parent=0 // pred_check_branch
    %11 = sbr.rel (0) target = $region5
  $region4: #{standard_ffn.1} parent=0 // pred_region
    _
  $region5: #{standard_ffn.1} parent=0 // pred_fallthru
    _
  // Predicated region
  $region6: #{standard_ffn.1} parent=0 // pred_check
    _
  $region7: #{standard_ffn.1} parent=0 // pred_check_branch
    %13 = sbr.rel (0) target = $region9
  $region8: #{standard_ffn.1} parent=0 // pred_region
    _
  $region9: #{standard_ffn.1} parent=0 // pred_fallthru
    _
  // Predicated region
  $region10: #{standard_ffn.1} parent=0 // pred_check
    _
  $region11: #{standard_ffn.1} parent=0 // pred_check_branch
    %15 = sbr.rel (0) target = $region13
  $region12: #{standard_ffn.1} parent=0 // pred_region
    _
  $region13: #{standard_ffn.1} parent=0 // pred_fallthru
    _
  // Predicated region
  $region14: #{standard_ffn.1} parent=0 // pred_check
    _
  $region15: #{standard_ffn.1} parent=0 // pred_check_branch
    %17 = sbr.rel (0) target = $region17
  $region16: #{standard_ffn.1} parent=0 // pred_region
    _
  $region17: #{standard_ffn.1} parent=0 // pred_fallthru
    _
  // Predicated region
  $region18: #{standard_ffn.1} parent=0 // pred_check
    _
  $region19: #{standard_ffn.1} parent=0 // pred_check_branch
    %19 = sbr.rel (0) target = $region21
  $region20: #{standard_ffn.1} parent=0 // pred_region
    _
  $region21: #{standard_ffn.1} parent=0 // pred_fallthru
    _
  %v20 = vld [vmem:[%s0] sm:$0xff]
  %v21 = vld [vmem:[%s0 + $0x8] sm:$0xff]
  %v22 = vld [vmem:[%s1] sm:$0xff]
  %v23 = vld [vmem:[%s1 + $0x8] sm:$0xff]
  %v24 = vld [vmem:[%s1 + $0x10] sm:$0xff]
  %v25 = vld [vmem:[%s1 + $0x18] sm:$0xff]
  %v26 = vld [vmem:[%s1 + $0x20] sm:$0xff]
  %v27 = vld [vmem:[%s1 + $0x28] sm:$0xff]
  %v28 = vld [vmem:[%s1 + $0x30] sm:$0xff]
  %v29 = vld [vmem:[%s1 + $0x38] sm:$0xff]
  %v30 = vld [vmem:[%s1 + $0x40] sm:$0xff]
  %v31 = vld [vmem:[%s1 + $0x48] sm:$0xff]
  %v32 = vld [vmem:[%s1 + $0x50] sm:$0xff]
  %v33 = vld [vmem:[%s1 + $0x58] sm:$0xff]
  %v34 = vld [vmem:[%s1 + $0x60] sm:$0xff]
  %v35 = vld [vmem:[%s1 + $0x68] sm:$0xff]
  %v36 = vld [vmem:[%s1 + $0x70] sm:$0xff]
  %v37 = vld [vmem:[%s1 + $0x78] sm:$0xff]
  %v38 = vld [vmem:[%s2] sm:$0x1]
  %v40 = vperm.slane %v38, 0
  %42 = vmatpush.msra.mxu0 %v37
  %43 = vmatpush.msra.mxu0 %v36
  %44 = vmatpush.msra.mxu0 %v35
  %45 = vmatpush.msra.mxu0 %v34
  %46 = vmatpush.msra.mxu0 %v33
  %47 = vmatpush.msra.mxu0 %v32
  %48 = vmatpush.msra.mxu0 %v31
  %49 = vmatpush.msra.mxu0 %v30
  %50 = vmatpush.msra.mxu0 %v29
  %51 = vmatpush.msra.mxu0 %v28
  %52 = vmatpush.msra.mxu0 %v27
  %53 = vmatpush.msra.mxu0 %v26
  %54 = vmatpush.msra.mxu0 %v25
  %55 = vmatpush.msra.mxu0 %v24
  %56 = vmatpush.msra.mxu0 %v23
  %57 = vmatpush.msra.mxu0 %v22
  %58 = vmatmul.f32.gmra.mxu0 %v20
  %v59 = vpop.f32.mrf.mxu0
  %v60 = vadd.f32 %v40, %v59
  %61 = vmatmul.f32.gmra.mxu0 %v21
  %v62 = vpop.f32.mrf.mxu0
  %v63 = vadd.f32 %v40, %v62
  %64 = vdwg.mxu0
  %v65 = vmax.f32 %v60, 0.0
  %v66 = vmax.f32 %v63, 0.0
  %v67 = vld [vmem:[%s3] sm:$0xff]
  %v68 = vld [vmem:[%s3 + $0x8] sm:$0xff]
  %v69 = vld [vmem:[%s3 + $0x10] sm:$0xff]
  %v70 = vld [vmem:[%s3 + $0x18] sm:$0xff]
  %v71 = vld [vmem:[%s3 + $0x20] sm:$0xff]
  %v72 = vld [vmem:[%s3 + $0x28] sm:$0xff]
  %v73 = vld [vmem:[%s3 + $0x30] sm:$0xff]
  %v74 = vld [vmem:[%s3 + $0x38] sm:$0xff]
  %v75 = vld [vmem:[%s3 + $0x40] sm:$0xff]
  %v76 = vld [vmem:[%s3 + $0x48] sm:$0xff]
  %v77 = vld [vmem:[%s3 + $0x50] sm:$0xff]
  %v78 = vld [vmem:[%s3 + $0x58] sm:$0xff]
  %v79 = vld [vmem:[%s3 + $0x60] sm:$0xff]
  %v80 = vld [vmem:[%s3 + $0x68] sm:$0xff]
  %v81 = vld [vmem:[%s3 + $0x70] sm:$0xff]
  %v82 = vld [vmem:[%s3 + $0x78] sm:$0xff]
  %v83 = vld [vmem:[%s4] sm:$0x1]
  %v85 = vperm.slane %v83, 0
  %87 = vmatpush.msra.mxu0 %v82
  %88 = vmatpush.msra.mxu0 %v81
  %89 = vmatpush.msra.mxu0 %v80
  %90 = vmatpush.msra.mxu0 %v79
  %91 = vmatpush.msra.mxu0 %v78
  %92 = vmatpush.msra.mxu0 %v77
  %93 = vmatpush.msra.mxu0 %v76
  %94 = vmatpush.msra.mxu0 %v75
  %95 = vmatpush.msra.mxu0 %v74
  %96 = vmatpush.msra.mxu0 %v73
  %97 = vmatpush.msra.mxu0 %v72
  %98 = vmatpush.msra.mxu0 %v71
  %99 = vmatpush.msra.mxu0 %v70
  %100 = vmatpush.msra.mxu0 %v69
  %101 = vmatpush.msra.mxu0 %v68
  %102 = vmatpush.msra.mxu0 %v67
  %103 = vmatmul.f32.gmra.mxu0 %v65
  %v104 = vpop.f32.mrf.mxu0
  %v105 = vadd.f32 %v85, %v104
  %106 = vmatmul.f32.gmra.mxu0 %v66
  %v107 = vpop.f32.mrf.mxu0
  %v108 = vadd.f32 %v85, %v107
  %109 = vdwg.mxu0
  %110 = vst [vmem:[%s5] sm:$0xff] %v105
  %111 = vst [vmem:[%s5 + $0x8] sm:$0xff] %v108
  // Predicated region
  $region22: #{standard_ffn.1} parent=0 // pred_check
    _
  $region23: #{standard_ffn.1} parent=0 // pred_check_branch
    %113 = sbr.rel (0) target = $region25
  $region24: #{standard_ffn.1} parent=0 // pred_region
    _
  $region25: #{standard_ffn.1} parent=0 // pred_fallthru
    _
  // Predicated region
  $region26: #{standard_ffn.1} parent=0 // pred_check
    _
  $region27: #{standard_ffn.1} parent=0 // pred_check_branch
    %115 = sbr.rel (0) target = $region29
  $region28: #{standard_ffn.1} parent=0 // pred_region
    _
  $region29: #{standard_ffn.1} parent=0 // pred_fallthru
    _

</llo_original>
